<compile_context>
chip_gen: v5e
topology: v5e:2x2
jax: 0.10.0
libtpu: 0.0.40
codegen_flags: <defaults>
</compile_context>

<pallas_src>
import functools

import jax
import jax.numpy as jnp
from jax import lax
from jax.experimental import pallas as pl
from jax.experimental.pallas import tpu as pltpu


def _dilated_residual_kernel(x_ref, wd_ref, bd_ref, w1_ref, b1_ref, o_ref,
                             *, dilation, C, T):
    # x_ref:  (Nb, C, T)   input block (also the residual)
    # wd_ref: (C, 3C)      fused dilated-conv weight; column block k holds tap k
    # bd_ref: (C, 1)       dilated conv bias
    # w1_ref: (C, C)       1x1 conv weight (Cout, Cin)
    # b1_ref: (C, 1)       1x1 conv bias
    # o_ref:  (Nb, C, T)
    d = dilation
    x = x_ref[...].astype(jnp.float32)                      # (Nb, C, T)
    Nb = x.shape[0]

    # Zero "same" padding built in VMEM: the 3 dilated taps as shifted views of x.
    z = jnp.zeros((Nb, C, d), jnp.float32)
    tap0 = jnp.concatenate([z, x[:, :, :T - d]], axis=2)    # x_pad[:, 0:T]
    tap2 = jnp.concatenate([x[:, :, d:], z], axis=2)        # x_pad[:, 2d:2d+T]
    xstack = jnp.concatenate([tap0, x, tap2], axis=1)       # (Nb, 3C, T)

    # Dilated conv: one batched MXU matmul over the fused 3C contraction dim.
    wd = jnp.broadcast_to(wd_ref[...], (Nb, C, 3 * C))
    h = jnp.einsum('nok,nkt->not', wd, xstack,
                   preferred_element_type=jnp.float32)
    h = jnp.maximum(h + bd_ref[...][None], 0.0)             # bias + ReLU (VPU)

    # 1x1 conv: second batched matmul.
    w1 = jnp.broadcast_to(w1_ref[...], (Nb, C, C))
    y = jnp.einsum('nok,nkt->not', w1, h,
                   preferred_element_type=jnp.float32)
    y = y + b1_ref[...][None]

    # TODO(synk): nn.Dropout() is identity in eval mode; training-mode dropout not emitted.
    o_ref[...] = (x + y).astype(o_ref.dtype)


def _pick_batch_block(N, C, T, itemsize=4, vmem_budget=8 << 20):
    """Batches per grid step: fits VMEM, keeps >=2 grid steps when N > 1 (megacore)."""
    per_batch = 4 * C * T * itemsize                        # in + out, double-buffered
    cap_vmem = max(1, vmem_budget // max(per_batch, 1))
    cap_par = max(1, N // 2) if N > 1 else 1
    nb = max(1, min(N, cap_vmem, cap_par))
    while N % nb:
        nb -= 1
    return nb


def dilated_residual_layer(x, w_dil, b_dil, w_1x1, b_1x1, dilation):
    """MSTCN2 DilatedResidualLayer forward (eval mode).

    x:     (N, C, T)
    w_dil: (C, C, 3)   PyTorch Conv1d weight (Cout, Cin, K=3)
    b_dil: (C,)
    w_1x1: (C, C)      PyTorch Conv1d(C, C, 1) weight, kernel dim squeezed
    b_1x1: (C,)
    Returns (N, C, T).
    """
    N, C, T = x.shape
    assert dilation < T, "dilation must be smaller than the sequence length"
    Nb = _pick_batch_block(N, C, T, itemsize=x.dtype.itemsize)

    # Kernel-friendly parameter layouts (tiny, done once by XLA outside the kernel).
    # (Cout, Cin, K) -> (Cout, K, Cin) -> (Cout, 3*Cin): column block k holds tap k.
    wd = jnp.transpose(w_dil, (0, 2, 1)).reshape(C, 3 * C)
    bd = b_dil.reshape(C, 1)
    b1 = b_1x1.reshape(C, 1)

    kernel = functools.partial(_dilated_residual_kernel,
                               dilation=dilation, C=C, T=T)

    return pl.pallas_call(
        kernel,
        out_shape=jax.ShapeDtypeStruct((N, C, T), x.dtype),
        grid_spec=pltpu.PrefetchScalarGridSpec(
            num_scalar_prefetch=0,
            grid=(N // Nb,),
            in_specs=[
                pl.BlockSpec((Nb, C, T), lambda n: (n, 0, 0)),
                pl.BlockSpec((C, 3 * C), lambda n: (0, 0)),
                pl.BlockSpec((C, 1), lambda n: (0, 0)),
                pl.BlockSpec((C, C), lambda n: (0, 0)),
                pl.BlockSpec((C, 1), lambda n: (0, 0)),
            ],
            out_specs=pl.BlockSpec((Nb, C, T), lambda n: (n, 0, 0)),
        ),
        compiler_params=pltpu.CompilerParams(dimension_semantics=("parallel",)),
    )(x, wd, bd, w_1x1, b1)


def _reference(x, w_dil, b_dil, w_1x1, b_1x1, dilation):
    # conv1d with dilation, 'same' padding, via lax (NCH layout, OIH weights)
    y = lax.conv_general_dilated(
        x, w_dil, window_strides=(1,), padding=[(dilation, dilation)],
        rhs_dilation=(dilation,), dimension_numbers=("NCH", "OIH", "NCH"))
    y = y + b_dil[None, :, None]
    y = jnp.maximum(y, 0.0)
    y = lax.conv_general_dilated(
        y, w_1x1[:, :, None], window_strides=(1,), padding=[(0, 0)],
        dimension_numbers=("NCH", "OIH", "NCH"))
    y = y + b_1x1[None, :, None]
    return x + y


if __name__ == "__main__":
    # Small shapes consistent with the module: batch=2, channels=8, seq=128, dilation=2.
    N, C, T, dilation = 2, 8, 128, 2

    key = jax.random.PRNGKey(0)
    k1, k2, k3, k4, k5 = jax.random.split(key, 5)

    x = jax.random.normal(k1, (N, C, T), dtype=jnp.float32)
    # Conv1d(C, C, 3) and Conv1d(C, C, 1) parameters in PyTorch-native layouts.
    w_dil = jax.random.normal(k2, (C, C, 3), dtype=jnp.float32) * 0.1   # (Cout, Cin, K)
    b_dil = jax.random.normal(k3, (C,), dtype=jnp.float32) * 0.1
    w_1x1 = jax.random.normal(k4, (C, C), dtype=jnp.float32) * 0.1      # (Cout, Cin)
    b_1x1 = jax.random.normal(k5, (C,), dtype=jnp.float32) * 0.1

    out = dilated_residual_layer(x, w_dil, b_dil, w_1x1, b_1x1, dilation)
    out = jax.block_until_ready(out)

    ref = _reference(x, w_dil, b_dil, w_1x1, b_1x1, dilation)
    assert out.shape == (N, C, T)
    assert jnp.allclose(out, ref, atol=1e-4, rtol=1e-4), "mismatch vs reference"

    print("KERNEL_OK")
</pallas_src>

<mosaic_0001>
module attributes {stable_mosaic.version = 11 : i64} {
  func.func @_dilated_residual_kernel(%arg0: i32, %arg1: memref<1x8x128xf32, #tpu.memory_space<vmem>>, %arg2: memref<8x24xf32, #tpu.memory_space<vmem>>, %arg3: memref<8x1xf32, #tpu.memory_space<vmem>>, %arg4: memref<8x8xf32, #tpu.memory_space<vmem>>, %arg5: memref<8x1xf32, #tpu.memory_space<vmem>>, %arg6: memref<1x8x128xf32, #tpu.memory_space<vmem>>) attributes {dimension_semantics = [#tpu.dimension_semantics<parallel>], iteration_bounds = array<i64: 2>, scalar_prefetch = 0 : i64, scratch_operands = 0 : i64, tpu.core_type = #tpu.core_type<tc>, window_params = [{transform_indices = @transform_0, window_bounds = array<i64: 1, 8, 128>}, {pipeline_mode = #tpu.pipeline_mode<synchronous>, transform_indices = @transform_1, window_bounds = array<i64: 8, 24>}, {pipeline_mode = #tpu.pipeline_mode<synchronous>, transform_indices = @transform_2, window_bounds = array<i64: 8, 1>}, {pipeline_mode = #tpu.pipeline_mode<synchronous>, transform_indices = @transform_3, window_bounds = array<i64: 8, 8>}, {pipeline_mode = #tpu.pipeline_mode<synchronous>, transform_indices = @transform_4, window_bounds = array<i64: 8, 1>}, {transform_indices = @transform_5, window_bounds = array<i64: 1, 8, 128>}]} {
    %c0 = arith.constant 0 : index
    %c0_0 = arith.constant 0 : index
    %c0_1 = arith.constant 0 : index
    %0 = vector.load %arg1[%c0, %c0_0, %c0_1] : memref<1x8x128xf32, #tpu.memory_space<vmem>>, vector<1x8x128xf32>
    %cst = arith.constant 0.000000e+00 : f32
    %1 = vector.broadcast %cst : f32 to vector<1x8x2xf32>
    %2 = vector.extract_strided_slice %0 {offsets = [0, 0, 0], sizes = [1, 8, 126], strides = [1, 1, 1]} : vector<1x8x128xf32> to vector<1x8x126xf32>
    %3 = tpu.concatenate %1, %2 in 2 : vector<1x8x2xf32>, vector<1x8x126xf32> -> vector<1x8x128xf32>
    %4 = vector.extract_strided_slice %0 {offsets = [0, 0, 2], sizes = [1, 8, 126], strides = [1, 1, 1]} : vector<1x8x128xf32> to vector<1x8x126xf32>
    %5 = tpu.concatenate %4, %1 in 2 : vector<1x8x126xf32>, vector<1x8x2xf32> -> vector<1x8x128xf32>
    %6 = tpu.concatenate %3, %0, %5 in 1 : vector<1x8x128xf32>, vector<1x8x128xf32>, vector<1x8x128xf32> -> vector<1x24x128xf32>
    %c0_2 = arith.constant 0 : index
    %c0_3 = arith.constant 0 : index
    %7 = vector.load %arg2[%c0_2, %c0_3] : memref<8x24xf32, #tpu.memory_space<vmem>>, vector<8x24xf32>
    %8 = vector.shape_cast %7 : vector<8x24xf32> to vector<1x8x24xf32>
    "tpu.trace_start"() <{level = 10 : i32, message = "nok,nkt->not"}> : () -> ()
    %cst_4 = arith.constant dense<0.000000e+00> : vector<1x8x128xf32>
    %9 = tpu.matmul %8, %6, %cst_4 {dimension_numbers = #tpu.dot_dimension_numbers<[2], [1], [1], [2], [0, 0, 0, 1, 1, 2], [0], [0]>} : vector<1x8x24xf32>, vector<1x24x128xf32>, vector<1x8x128xf32> -> vector<1x8x128xf32>
    "tpu.trace_stop"() : () -> ()
    %c0_5 = arith.constant 0 : index
    %c0_6 = arith.constant 0 : index
    %10 = vector.load %arg3[%c0_5, %c0_6] : memref<8x1xf32, #tpu.memory_space<vmem>>, vector<8x1xf32>
    %11 = vector.shape_cast %10 : vector<8x1xf32> to vector<1x8x1xf32>
    %12 = vector.broadcast %11 : vector<1x8x1xf32> to vector<1x8x128xf32>
    %13 = arith.addf %9, %12 : vector<1x8x128xf32>
    %cst_7 = arith.constant 0.000000e+00 : f32
    %14 = vector.broadcast %cst_7 : f32 to vector<1x8x128xf32>
    %15 = arith.maximumf %13, %14 : vector<1x8x128xf32>
    %c0_8 = arith.constant 0 : index
    %c0_9 = arith.constant 0 : index
    %16 = vector.load %arg4[%c0_8, %c0_9] : memref<8x8xf32, #tpu.memory_space<vmem>>, vector<8x8xf32>
    %17 = vector.shape_cast %16 : vector<8x8xf32> to vector<1x8x8xf32>
    "tpu.trace_start"() <{level = 10 : i32, message = "nok,nkt->not"}> : () -> ()
    %cst_10 = arith.constant dense<0.000000e+00> : vector<1x8x128xf32>
    %18 = tpu.matmul %17, %15, %cst_10 {dimension_numbers = #tpu.dot_dimension_numbers<[2], [1], [1], [2], [0, 0, 0, 1, 1, 2], [0], [0]>} : vector<1x8x8xf32>, vector<1x8x128xf32>, vector<1x8x128xf32> -> vector<1x8x128xf32>
    "tpu.trace_stop"() : () -> ()
    %c0_11 = arith.constant 0 : index
    %c0_12 = arith.constant 0 : index
    %19 = vector.load %arg5[%c0_11, %c0_12] : memref<8x1xf32, #tpu.memory_space<vmem>>, vector<8x1xf32>
    %20 = vector.shape_cast %19 : vector<8x1xf32> to vector<1x8x1xf32>
    %21 = vector.broadcast %20 : vector<1x8x1xf32> to vector<1x8x128xf32>
    %22 = arith.addf %18, %21 : vector<1x8x128xf32>
    %23 = arith.addf %0, %22 : vector<1x8x128xf32>
    %c0_13 = arith.constant 0 : index
    %c0_14 = arith.constant 0 : index
    %c0_15 = arith.constant 0 : index
    %24 = vector.load %arg6[%c0_13, %c0_14, %c0_15] : memref<1x8x128xf32, #tpu.memory_space<vmem>>, vector<1x8x128xf32>
    tpu.vector_store %arg6[%c0_13, %c0_14, %c0_15], %23 {strides = array<i32>} : memref<1x8x128xf32, #tpu.memory_space<vmem>>, vector<1x8x128xf32>,
    return
  }
  func.func @transform_0(%arg0: i32) -> (i32, i32, i32) {
    %c0_i32 = arith.constant 0 : i32
    %c0_i32_0 = arith.constant 0 : i32
    %c0_i32_1 = arith.constant 0 : i32
    return %arg0, %c0_i32, %c0_i32_0 : i32, i32, i32
  }
  func.func @transform_1(%arg0: i32) -> (i32, i32) {
    %c0_i32 = arith.constant 0 : i32
    %c0_i32_0 = arith.constant 0 : i32
    %c0_i32_1 = arith.constant 0 : i32
    return %c0_i32, %c0_i32_0 : i32, i32
  }
  func.func @transform_2(%arg0: i32) -> (i32, i32) {
    %c0_i32 = arith.constant 0 : i32
    %c0_i32_0 = arith.constant 0 : i32
    %c0_i32_1 = arith.constant 0 : i32
    return %c0_i32, %c0_i32_0 : i32, i32
  }
  func.func @transform_3(%arg0: i32) -> (i32, i32) {
    %c0_i32 = arith.constant 0 : i32
    %c0_i32_0 = arith.constant 0 : i32
    %c0_i32_1 = arith.constant 0 : i32
    return %c0_i32, %c0_i32_0 : i32, i32
  }
  func.func @transform_4(%arg0: i32) -> (i32, i32) {
    %c0_i32 = arith.constant 0 : i32
    %c0_i32_0 = arith.constant 0 : i32
    %c0_i32_1 = arith.constant 0 : i32
    return %c0_i32, %c0_i32_0 : i32, i32
  }
  func.func @transform_5(%arg0: i32) -> (i32, i32, i32) {
    %c0_i32 = arith.constant 0 : i32
    %c0_i32_0 = arith.constant 0 : i32
    %c0_i32_1 = arith.constant 0 : i32
    return %arg0, %c0_i32, %c0_i32_0 : i32, i32, i32
  }
}

</mosaic_0001>

<llo_original>
// kernel: tpu_custom_call.1
$region0: #{tpu_custom_call.1}
  #allocation0 [shape = 'u32[]', space=smem, size = 0x4, offset = 0x4, fixed_abs, tag = 'smem constant byte address 0x4 - core index']
  #allocation1 [shape = 'u32[72,128]{1,0:T(1,128)}', space=vmem, size = 0x9000, scoped, tag = 'internal scratch']
  %s0 = inlined_call_operand.vmem [shape: f32[2,8,128], index: 0, kind: input, shape index: {}]
  %s1 = inlined_call_operand.hbm [shape: f32[8,24], index: 1, kind: input, shape index: {}]
  %s2 = inlined_call_operand.vmem [shape: f32[8,1], index: 2, kind: input, shape index: {}]
  %s3 = inlined_call_operand.hbm [shape: f32[8,8], index: 3, kind: input, shape index: {}]
  %s4 = inlined_call_operand.vmem [shape: f32[8,1], index: 4, kind: input, shape index: {}]
  %s5 = inlined_call_operand.hbm [shape: f32[2,8,128], index: 5, kind: output, shape index: {}]
  %s6 = sld [smem:[#allocation0]]
  $region61: #{tpu_custom_call.1} parent=0
    _
  %s8 = ssub.s32 1, %s6
  %s9 = scalar_select 0, %s8, %s6
  $region1: #{tpu_custom_call.1} parent=0
    #allocation2 [shape = 'u8[4096]{0}', space=vmem, size = 0x1000, scoped, tag = 'input window, operand 1, single buffered']
    #allocation3 [shape = 's32[2]{0}', space=sflag, size = 0x8, scoped, tag = 'scoped memory for tpu_custom_call.1']
    #allocation4 [shape = 's32[2]{0}', space=sflag, size = 0x8, scoped, tag = 'scoped memory for tpu_custom_call.1']
    #allocation5 [shape = 'u8[4096]{0}', space=vmem, size = 0x1000, scoped, tag = 'input window, operand 3, single buffered']
    #allocation6 [shape = 's32[1]{0}', space=sflag, size = 0x4, scoped, tag = 'scoped memory for tpu_custom_call.1']
    #allocation7 [shape = 'u8[8192]{0}', space=vmem, size = 0x2000, scoped, tag = 'output window, operand 0']
    %10 = vsyncpa [#allocation3], 0
    %11 = vsyncpa [#allocation6], 0
    %12 = vsyncpa [#allocation4], 0
    %s13 = scalar_lea.sflag [#allocation4], 1
    %14 = vsyncpa %s13, 0
    loop: start=0, step=1, limit=4
    $region2: #{tpu_custom_call.1} parent=1 // loop_pre_header
      _
    $region3: #{tpu_custom_call.1} parent=1 // loop_header
      %s16 = sphi 0, %s20
      %p17 = scmp.ge.s32.totalorder %s16, 4
      %s26 = sphi 0, %s28
      %s29 = sphi 0, %s26
      %s30 = sphi 0, %s29
      %s46 = sphi 0, %s30
      %s50 = sphi 0, %s50
      %s52 = sphi 0, %s50
      %s53 = sphi 0, %s52
      %s67 = sphi 0, %s53
      %s71 = sphi 0, %s71
      %s73 = sphi 0, %s71
      %s74 = sphi 0, %s73
      %s88 = sphi 0, %s74
      %s92 = sphi 0, %s92
      %s94 = sphi 0, %s92
      %s95 = sphi 0, %s94
      %s109 = sphi 0, %s95
      %s113 = sphi 0, %s113
      %s115 = sphi 0, %s113
      %s116 = sphi 0, %s115
      %s130 = sphi 0, %s116
      %s136 = sphi 0, %s138
      %s139 = sphi 0, %s136
      %s140 = sphi 0, %s139
      %s156 = sphi 0, %s140
    $region4: #{tpu_custom_call.1} parent=1 // loop_header_branch
      %19 = sbr.rel (%p17) target = $region8
    $region5: #{tpu_custom_call.1} parent=1 // loop_body
      %s21 = ssub.s32 %s16, 1
      %s22 = ssub.s32 %s16, 2
      %s23 = sadd.s32 %s16, 1
      %s24 = ssub.s32 %s16, %s23
      %p25 = scmp.eq.s32.totalorder %s24, 0
      %s27 = sadd.s32 %s26, 1
      %s28 = scalar_select %p25, %s26, %s27
      %p31 = pneg %p25
      %p32 = scmp.eq.s32.totalorder %s16, 1
      %p33 = por %p31, %p32
      %p34 = scmp.ne.s32.totalorder %s26, %s29
      %p35 = scmp.eq.s32.totalorder %s16, 0
      %p36 = por %p34, %p35
      %p37 = scmp.ne.s32.totalorder %s26, %s29
      %p38 = scmp.eq.s32.totalorder %s21, 1
      %p39 = por %p37, %p38
      %p40 = scmp.ne.s32.totalorder %s29, %s30
      %p41 = scmp.eq.s32.totalorder %s21, 0
      %p42 = por %p40, %p41
      %p43 = scmp.ne.s32.totalorder %s29, %s30
      %p44 = scmp.eq.s32.totalorder %s22, 1
      %p45 = por %p43, %p44
      %p47 = scmp.ne.s32.totalorder %s30, %s46
      %p48 = scmp.eq.s32.totalorder %s22, 0
      %p49 = por %p47, %p48
      %s51 = sadd.s32 %s50, 1
      %p54 = scmp.eq.s32.totalorder %s16, 1
      %p55 = scmp.ne.s32.totalorder %s50, %s52
      %p56 = scmp.eq.s32.totalorder %s16, 0
      %p57 = por %p55, %p56
      %p58 = scmp.ne.s32.totalorder %s50, %s52
      %p59 = scmp.eq.s32.totalorder %s21, 1
      %p60 = por %p58, %p59
      %p61 = scmp.ne.s32.totalorder %s52, %s53
      %p62 = scmp.eq.s32.totalorder %s21, 0
      %p63 = por %p61, %p62
      %p64 = scmp.ne.s32.totalorder %s52, %s53
      %p65 = scmp.eq.s32.totalorder %s22, 1
      %p66 = por %p64, %p65
      %p68 = scmp.ne.s32.totalorder %s53, %s67
      %p69 = scmp.eq.s32.totalorder %s22, 0
      %p70 = por %p68, %p69
      %s72 = sadd.s32 %s71, 1
      %p75 = scmp.eq.s32.totalorder %s16, 1
      %p76 = scmp.ne.s32.totalorder %s71, %s73
      %p77 = scmp.eq.s32.totalorder %s16, 0
      %p78 = por %p76, %p77
      %p79 = scmp.ne.s32.totalorder %s71, %s73
      %p80 = scmp.eq.s32.totalorder %s21, 1
      %p81 = por %p79, %p80
      %p82 = scmp.ne.s32.totalorder %s73, %s74
      %p83 = scmp.eq.s32.totalorder %s21, 0
      %p84 = por %p82, %p83
      %p85 = scmp.ne.s32.totalorder %s73, %s74
      %p86 = scmp.eq.s32.totalorder %s22, 1
      %p87 = por %p85, %p86
      %p89 = scmp.ne.s32.totalorder %s74, %s88
      %p90 = scmp.eq.s32.totalorder %s22, 0
      %p91 = por %p89, %p90
      %s93 = sadd.s32 %s92, 1
      %p96 = scmp.eq.s32.totalorder %s16, 1
      %p97 = scmp.ne.s32.totalorder %s92, %s94
      %p98 = scmp.eq.s32.totalorder %s16, 0
      %p99 = por %p97, %p98
      %p100 = scmp.ne.s32.totalorder %s92, %s94
      %p101 = scmp.eq.s32.totalorder %s21, 1
      %p102 = por %p100, %p101
      %p103 = scmp.ne.s32.totalorder %s94, %s95
      %p104 = scmp.eq.s32.totalorder %s21, 0
      %p105 = por %p103, %p104
      %p106 = scmp.ne.s32.totalorder %s94, %s95
      %p107 = scmp.eq.s32.totalorder %s22, 1
      %p108 = por %p106, %p107
      %p110 = scmp.ne.s32.totalorder %s95, %s109
      %p111 = scmp.eq.s32.totalorder %s22, 0
      %p112 = por %p110, %p111
      %s114 = sadd.s32 %s113, 1
      %p117 = scmp.eq.s32.totalorder %s16, 1
      %p118 = scmp.ne.s32.totalorder %s113, %s115
      %p119 = scmp.eq.s32.totalorder %s16, 0
      %p120 = por %p118, %p119
      %p121 = scmp.ne.s32.totalorder %s113, %s115
      %p122 = scmp.eq.s32.totalorder %s21, 1
      %p123 = por %p121, %p122
      %p124 = scmp.ne.s32.totalorder %s115, %s116
      %p125 = scmp.eq.s32.totalorder %s21, 0
      %p126 = por %p124, %p125
      %p127 = scmp.ne.s32.totalorder %s115, %s116
      %p128 = scmp.eq.s32.totalorder %s22, 1
      %p129 = por %p127, %p128
      %p131 = scmp.ne.s32.totalorder %s116, %s130
      %p132 = scmp.eq.s32.totalorder %s22, 0
      %p133 = por %p131, %p132
      %s134 = ssub.s32 %s16, %s23
      %p135 = scmp.eq.s32.totalorder %s134, 0
      %s137 = sadd.s32 %s136, 1
      %s138 = scalar_select %p135, %s136, %s137
      %p141 = pneg %p135
      %p142 = scmp.eq.s32.totalorder %s16, 1
      %p143 = por %p141, %p142
      %p144 = scmp.ne.s32.totalorder %s136, %s139
      %p145 = scmp.eq.s32.totalorder %s16, 0
      %p146 = por %p144, %p145
      %p147 = scmp.ne.s32.totalorder %s136, %s139
      %p148 = scmp.eq.s32.totalorder %s21, 1
      %p149 = por %p147, %p148
      %p150 = scmp.ne.s32.totalorder %s139, %s140
      %p151 = scmp.eq.s32.totalorder %s21, 0
      %p152 = por %p150, %p151
      %p153 = scmp.ne.s32.totalorder %s139, %s140
      %p154 = scmp.eq.s32.totalorder %s22, 1
      %p155 = por %p153, %p154
      %p157 = scmp.ne.s32.totalorder %s140, %s156
      %p158 = scmp.eq.s32.totalorder %s22, 0
      %p159 = por %p157, %p158
      %p160 = scmp.le.s32.totalorder 1, %s16
      %p161 = scmp.lt.s32.totalorder %s16, 3
      %p162 = pnand %p160, %p161
      %p163 = pneg %p162
      // Predicated region
      $region9: #{tpu_custom_call.1} parent=5 // pred_check
        _
      $region10: #{tpu_custom_call.1} parent=5 // pred_check_branch
        %165 = sbr.rel (%p162) target = $region12
      $region11: #{tpu_custom_call.1} parent=5 // pred_region
        %s166 = ssub.s32 %s16, 1
        // Predicated region
        $region13: #{tpu_custom_call.1} parent=11 // pred_check
          %p167 = pneg %p63
        $region14: #{tpu_custom_call.1} parent=11 // pred_check_branch
          %169 = sbr.rel (%p167) target = $region16
        $region15: #{tpu_custom_call.1} parent=11 // pred_region
          %171 = vsyncadd [#allocation3], 0
          %s173 = sshll.u32 %s1, 4
          %s174 = int_to_ptr.hbm [resolvable:$true] %s173
          %s175 = sshll.u32 [#allocation2], 4
          %s176 = int_to_ptr.vmem [resolvable:$true] %s175
          %178 = dma.hbm_to_vmem [thread:$0]  %s174, 128, %s176, [#allocation3]
        $region16: #{tpu_custom_call.1} parent=11 // pred_fallthru
          _
        // Predicated region
        $region17: #{tpu_custom_call.1} parent=11 // pred_check
          %p179 = pneg %p84
        $region18: #{tpu_custom_call.1} parent=11 // pred_check_branch
          %181 = sbr.rel (%p179) target = $region20
        $region19: #{tpu_custom_call.1} parent=11 // pred_region
          _
        $region20: #{tpu_custom_call.1} parent=11 // pred_fallthru
          _
        // Predicated region
        $region21: #{tpu_custom_call.1} parent=11 // pred_check
          %p182 = pneg %p105
        $region22: #{tpu_custom_call.1} parent=11 // pred_check_branch
          %184 = sbr.rel (%p182) target = $region24
        $region23: #{tpu_custom_call.1} parent=11 // pred_region
          %186 = vsyncadd [#allocation6], 0
          %s188 = sshll.u32 %s3, 4
          %s189 = int_to_ptr.hbm [resolvable:$true] %s188
          %s190 = sshll.u32 [#allocation5], 4
          %s191 = int_to_ptr.vmem [resolvable:$true] %s190
          %193 = dma.hbm_to_vmem [thread:$0]  %s189, 128, %s191, [#allocation6]
        $region24: #{tpu_custom_call.1} parent=11 // pred_fallthru
          _
        // Predicated region
        $region25: #{tpu_custom_call.1} parent=11 // pred_check
          %p194 = pneg %p126
        $region26: #{tpu_custom_call.1} parent=11 // pred_check_branch
          %196 = sbr.rel (%p194) target = $region28
        $region27: #{tpu_custom_call.1} parent=11 // pred_region
          _
        $region28: #{tpu_custom_call.1} parent=11 // pred_fallthru
          _
      $region12: #{tpu_custom_call.1} parent=5 // pred_fallthru
        _
      %p197 = scmp.lt.s32.totalorder %s16, 2
      // Predicated region
      $region29: #{tpu_custom_call.1} parent=5 // pred_check
        %p198 = pneg %p197
      $region30: #{tpu_custom_call.1} parent=5 // pred_check_branch
        %200 = sbr.rel (%p198) target = $region32
      $region31: #{tpu_custom_call.1} parent=5 // pred_region
        // Predicated region
        $region33: #{tpu_custom_call.1} parent=31 // pred_check
          %p201 = pneg %p36
        $region34: #{tpu_custom_call.1} parent=31 // pred_check_branch
          %203 = sbr.rel (%p201) target = $region36
        $region35: #{tpu_custom_call.1} parent=31 // pred_region
          %p204 = scmp.lt.s32.totalorder %s16, 1
          %s205 = scalar_select %p204, %s16, 1
          %s206 = smul.addr %s205, 8
          %s207 = scalar_lea.vmem %s0, %s206
        $region36: #{tpu_custom_call.1} parent=31 // pred_fallthru
          _
      $region32: #{tpu_custom_call.1} parent=5 // pred_fallthru
        _
      %p208 = scmp.le.s32.totalorder 1, %s16
      %p209 = scmp.lt.s32.totalorder %s16, 3
      %p210 = pnand %p208, %p209
      %p211 = pneg %p210
      // Predicated region
      $region37: #{tpu_custom_call.1} parent=5 // pred_check
        _
      $region38: #{tpu_custom_call.1} parent=5 // pred_check_branch
        %213 = sbr.rel (%p210) target = $region40
      $region39: #{tpu_custom_call.1} parent=5 // pred_region
        %s214 = ssub.s32 %s16, 1
        // Predicated region
        $region41: #{tpu_custom_call.1} parent=39 // pred_check
          %p215 = pneg %p63
        $region42: #{tpu_custom_call.1} parent=39 // pred_check_branch
          %217 = sbr.rel (%p215) target = $region44
        $region43: #{tpu_custom_call.1} parent=39 // pred_region
          %219 = dma.done [#allocation3], 128
        $region44: #{tpu_custom_call.1} parent=39 // pred_fallthru
          _
        // Predicated region
        $region45: #{tpu_custom_call.1} parent=39 // pred_check
          %p220 = pneg %p105
        $region46: #{tpu_custom_call.1} parent=39 // pred_check_branch
          %222 = sbr.rel (%p220) target = $region48
        $region47: #{tpu_custom_call.1} parent=39 // pred_region
          %224 = dma.done [#allocation6], 128
        $region48: #{tpu_custom_call.1} parent=39 // pred_fallthru
          _
        %p225 = scmp.lt.s32.totalorder %s21, 1
        %s226 = scalar_select %p225, %s21, 1
        %s227 = smul.addr %s226, 8
        %s228 = scalar_lea.vmem %s0, %s227
        %p229 = pneg %p42
        %p230 = pneg %p39
        %p231 = pneg %p63
        %p232 = pneg %p60
        %p233 = pneg %p84
        %p234 = pneg %p81
        %p235 = pneg %p105
        %p236 = pneg %p102
        %p237 = pneg %p126
        %p238 = pneg %p123
        %p239 = pneg %p152
        %p240 = pneg %p149
        %s241 = sand.u32 %s139, 1
        %s242 = scalar_lea.sflag [#allocation4], %s241
        %s243 = sand.u32 %s139, 1
        %s244 = smul.addr %s243, 8
        %s245 = scalar_lea.vmem [#allocation7], %s244
        %p246 = scmp.lt.s32.totalorder %s21, 1
        %s247 = scalar_select %p246, %s21, 1
        %s248 = smul.addr %s247, 8
        %s249 = scalar_lea.vmem %s0, %s248
        %v250 = vld [vmem:[%s249] sm:$0xff]
        %252 = vrot.lane.b32.xlu0 %v250, 2
        %v253 = vpop.permute.xlu0 %252
        %vm255 = vcmask 15360
        %v256 = vsel %vm255, 0.0, %v253
        %257 = vrot.lane.b32.xlu0 %v250, 126
        %v258 = vpop.permute.xlu0 %257
        %vm260 = vcmask 1031168
        %v261 = vsel %vm260, %v258, 0.0
        %v262 = vld [vmem:[#allocation2] sm:$0xff]
        %v263 = vld [vmem:[%s2] sm:$0xff]
        %265 = vset.pattern.permute.xlu0 0
        %266 = vperm.xlu0 %265, %v263
        %v267 = vpop.permute.xlu0 %266
        %vm269 = vcmask 195584
        %v271 = vsel %vm269, %v262, 0
        %273 = vmatpush.msra.mxu0 0.0
        %274 = vmatpush.msra.mxu0 0.0
        %275 = vmatpush.msra.mxu0 0.0
        %276 = vmatpush.msra.mxu0 0.0
        %277 = vmatpush.msra.mxu0 0.0
        %278 = vmatpush.msra.mxu0 0.0
        %279 = vmatpush.msra.mxu0 0.0
        %280 = vmatpush.msra.mxu0 0.0
        %281 = vmatpush.msra.mxu0 0.0
        %282 = vmatpush.msra.mxu0 0.0
        %283 = vmatpush.msra.mxu0 0.0
        %284 = vmatpush.msra.mxu0 0.0
        %285 = vmatpush.msra.mxu0 0.0
        %286 = vmatpush.msra.mxu0 %v261
        %287 = vmatpush.msra.mxu0 %v250
        %288 = vmatpush.msra.mxu0 %v256
        %289 = vmatmul.f32.gmra.mxu0 %v271
        %v290 = vpop.f32.mrf.mxu0
        %v291 = vadd.f32 %v267, %v290
        %292 = vdwg.mxu0
        %v293 = vmax.f32 %v291, 0.0
        %v294 = vld [vmem:[#allocation5] sm:$0xff]
        %v295 = vld [vmem:[%s4] sm:$0xff]
        %297 = vset.pattern.permute.xlu0 0
        %298 = vperm.xlu0 %297, %v295
        %v299 = vpop.permute.xlu0 %298
        %vm301 = vcmask 64512
        %v303 = vsel %vm301, %v294, 0
        %305 = vmatpush.msra.mxu0 0.0
        %306 = vmatpush.msra.mxu0 0.0
        %307 = vmatpush.msra.mxu0 0.0
        %308 = vmatpush.msra.mxu0 0.0
        %309 = vmatpush.msra.mxu0 0.0
        %310 = vmatpush.msra.mxu0 0.0
        %311 = vmatpush.msra.mxu0 0.0
        %312 = vmatpush.msra.mxu0 0.0
        %313 = vmatpush.msra.mxu0 0.0
        %314 = vmatpush.msra.mxu0 0.0
        %315 = vmatpush.msra.mxu0 0.0
        %316 = vmatpush.msra.mxu0 0.0
        %317 = vmatpush.msra.mxu0 0.0
        %318 = vmatpush.msra.mxu0 0.0
        %319 = vmatpush.msra.mxu0 0.0
        %320 = vmatpush.msra.mxu0 %v293
        %321 = vmatmul.f32.gmra.mxu0 %v303
        %v322 = vpop.f32.mrf.mxu0
        %v323 = vadd.f32 %v299, %v322
        %324 = vdwg.mxu0
        %v325 = vadd.f32 %v250, %v323
        %326 = vst [vmem:[%s245] sm:$0xff] %v325
        %s327 = sand.u32 %s139, 1
        %s328 = scalar_lea.sflag [#allocation4], %s327
        %s329 = sand.u32 %s139, 1
        %s330 = smul.addr %s329, 8
        %s331 = scalar_lea.vmem [#allocation7], %s330
        // Predicated region
        $region49: #{tpu_custom_call.1} parent=39 // pred_check
          %p332 = pneg %p149
        $region50: #{tpu_custom_call.1} parent=39 // pred_check_branch
          %334 = sbr.rel (%p332) target = $region52
        $region51: #{tpu_custom_call.1} parent=39 // pred_region
          %336 = vsyncadd %s328, 0
          %s337 = smul.addr %s21, 8
          %s338 = scalar_lea.hbm %s5, %s337
          %s340 = sshll.u32 %s331, 4
          %s341 = int_to_ptr.vmem [resolvable:$true] %s340
          %s342 = sshll.u32 %s338, 4
          %s343 = int_to_ptr.hbm [resolvable:$true] %s342
          %345 = dma.vmem_to_hbm [thread:$0]  %s341, 128, %s343, %s328
        $region52: #{tpu_custom_call.1} parent=39 // pred_fallthru
          _
      $region40: #{tpu_custom_call.1} parent=5 // pred_fallthru
        _
      %p346 = scmp.le.s32.totalorder 2, %s16
      // Predicated region
      $region53: #{tpu_custom_call.1} parent=5 // pred_check
        %p347 = pneg %p346
      $region54: #{tpu_custom_call.1} parent=5 // pred_check_branch
        %349 = sbr.rel (%p347) target = $region56
      $region55: #{tpu_custom_call.1} parent=5 // pred_region
        %s350 = ssub.s32 %s16, 2
        // Predicated region
        $region57: #{tpu_custom_call.1} parent=55 // pred_check
          %p351 = pneg %p155
        $region58: #{tpu_custom_call.1} parent=55 // pred_check_branch
          %353 = sbr.rel (%p351) target = $region60
        $region59: #{tpu_custom_call.1} parent=55 // pred_region
          %s354 = sand.u32 %s140, 1
          %s355 = scalar_lea.sflag [#allocation4], %s354
          %s356 = sand.u32 %s140, 1
          %s357 = smul.addr %s356, 8
          %s358 = scalar_lea.vmem [#allocation7], %s357
          %360 = dma.done %s355, 128
        $region60: #{tpu_custom_call.1} parent=55 // pred_fallthru
          _
      $region56: #{tpu_custom_call.1} parent=5 // pred_fallthru
        _
    $region6: #{tpu_custom_call.1} parent=1 // loop_footer
      %s20 = sadd.s32 1, %s16
    $region7: #{tpu_custom_call.1} parent=1 // loop_footer_branch
      %15 = sbr.rel target = $region3
    $region8: #{tpu_custom_call.1} parent=1 // loop_exit
      _
    %361 = vsyncpa [#allocation3], 1
    %s362 = scalar_lea.sflag [#allocation3], 1
    %363 = vsyncpa %s362, 1
    %364 = vsyncpa [#allocation6], 1
    %365 = vsyncpa [#allocation4], 1
    %s366 = scalar_lea.sflag [#allocation4], 1
    %367 = vsyncpa %s366, 1

</llo_original>
